<compile_context>
chip_gen: v7x
topology: tpu7x:2x2x1
jax: 0.10.0
libtpu: 0.0.40
codegen_flags: <defaults>
</compile_context>

<pallas_src>
import functools

import jax
import jax.numpy as jnp
from jax import lax
from jax.experimental import pallas as pl
from jax.experimental.pallas import tpu as pltpu


def _round_up(a, b):
    return (a + b - 1) // b * b


# -----------------------------------------------------------------------------
# Kernel 1: edge-strength weight map from the raw labels.
#   conv3x3([[-1,-1,-1],[-1,8,-1],[-1,-1,-1]]/3, zero pad) > 0.1
#   -> 7x7 stride-1 max-pool -> weight = edge_weight where edge else 1.0
# -----------------------------------------------------------------------------
def _edge_weight_kernel(labels_ref, w_ref, *, edge_weight, pool_radius):
    lab = labels_ref[...].astype(jnp.float32)            # (Hp, Wp)

    def shift_zero(arr, d, axis):
        # out[i] = arr[i - d] along `axis`, zero-filled at the borders.
        size = arr.shape[axis]
        rolled = pltpu.roll(arr, shift=d % size, axis=axis)
        idx = lax.broadcasted_iota(jnp.int32, arr.shape, axis)
        keep = (idx >= d) if d >= 0 else (idx < size + d)
        return jnp.where(keep, rolled, 0.0)

    # 3x3 box sum (separable); sobel-like conv == (9*x - boxsum3) / 3
    row3 = lab + shift_zero(lab, 1, 0) + shift_zero(lab, -1, 0)
    box3 = row3 + shift_zero(row3, 1, 1) + shift_zero(row3, -1, 1)
    conv = (9.0 * lab - box3) * (1.0 / 3.0)
    e0 = jnp.where(conv > 0.1, 1.0, 0.0)

    # 7x7 stride-1 max pool of a 0/1 mask == separable box sum > 0
    acc_h = e0
    for d in range(1, pool_radius + 1):
        acc_h = acc_h + shift_zero(e0, d, 0) + shift_zero(e0, -d, 0)
    acc = acc_h
    for d in range(1, pool_radius + 1):
        acc = acc + shift_zero(acc_h, d, 1) + shift_zero(acc_h, -d, 1)

    w_ref[...] = jnp.where(acc > 0.0, edge_weight, 1.0)


def _compute_edge_weights(labels, edge_weight, pool_kernel):
    N, H, W = labels.shape
    Hp = _round_up(max(H, 8), 8)
    Wp = _round_up(max(W, 128), 128)
    # zero padding beyond the true extent reproduces conv2d's zero pad exactly and
    # produces e0 == 0 in the pad region (labels >= 0 => conv <= 0 there).
    lab_p = jnp.pad(labels, ((0, 0), (0, Hp - H), (0, Wp - W)))

    kernel = functools.partial(
        _edge_weight_kernel,
        edge_weight=float(edge_weight),
        pool_radius=pool_kernel // 2,
    )
    w_p = pl.pallas_call(
        kernel,
        out_shape=jax.ShapeDtypeStruct((N, Hp, Wp), jnp.float32),
        grid=(N,),
        in_specs=[pl.BlockSpec((None, Hp, Wp), lambda n: (n, 0, 0))],
        out_specs=pl.BlockSpec((None, Hp, Wp), lambda n: (n, 0, 0)),
        compiler_params=pltpu.CompilerParams(
            dimension_semantics=("parallel",),
            vmem_limit_bytes=32 * 1024 * 1024,
        ),
    )(lab_p)
    return w_p[:, :H, :W]


# -----------------------------------------------------------------------------
# Kernel 2: fused SCE (label-smoothed, edge-weighted, reduction='sum') + soft-Dice
# partial sums over one (1, C, TR, 128) logits block.
# -----------------------------------------------------------------------------
def _sce_dice_partial_kernel(logits_ref, labels_ref, weights_ref, out_ref, *,
                             C, ignore_index):
    x = logits_ref[...].astype(jnp.float32)     # (C, TR, 128)
    labels = labels_ref[...]                    # (TR, 128) int32
    w = weights_ref[...]                        # (TR, 128) f32

    # --- fused log-softmax pieces: exactly one exp per (class, pixel) ---
    m = jnp.max(x, axis=0)                      # (TR, 128)
    u = jnp.exp(x - m[None, :, :])              # (C, TR, 128)
    se = jnp.sum(u, axis=0)                     # (TR, 128)
    lse = m + jnp.log(se)                       # log-sum-exp
    inv_se = pl.reciprocal(se, approx=True)
    sum_x = jnp.sum(x, axis=0)

    pad = labels == ignore_index
    valid = jnp.where(pad, 0.0, 1.0)

    # smooth_loss = -sum_c logprob_c = C*lse - sum_c x_c (closed form)
    smooth = jnp.where(pad, 0.0, float(C) * lse - sum_x)

    lane1 = lax.broadcasted_iota(jnp.int32, (1, 128), 1)
    inter_vec = jnp.zeros((1, 128), jnp.float32)
    psum_vec = jnp.zeros((1, 128), jnp.float32)
    tsum_vec = jnp.zeros((1, 128), jnp.float32)
    x_tgt = jnp.zeros_like(m)

    # Single fused pass over C: one-hot NLL gather, softmax prob, dice stats.
    # (C is small here, so the loop is unrolled; use lax.fori_loop for large C.)
    for c in range(C):
        is_c = labels == c
        x_tgt = x_tgt + jnp.where(is_c, x[c], 0.0)
        p_c = u[c] * inv_se * valid             # softmax prob, ignore-masked
        t_c = jnp.where(is_c, valid, 0.0)       # one-hot target, ignore-masked
        inter_vec = inter_vec + jnp.where(lane1 == c, jnp.sum(p_c * t_c), 0.0)
        psum_vec = psum_vec + jnp.where(lane1 == c, jnp.sum(p_c), 0.0)
        tsum_vec = tsum_vec + jnp.where(lane1 == c, jnp.sum(t_c), 0.0)

    nll = jnp.where(pad, 0.0, lse - x_tgt)
    nll_wsum = jnp.sum(nll * w)
    smooth_wsum = jnp.sum(smooth * w)

    # Pack this block's partial sums into one lane-dense (8, 128) tile:
    #   row 0: per-class dice intersection, row 1: per-class sum(p),
    #   row 2: per-class sum(t), row 3 lane 0: weighted nll sum,
    #   row 4 lane 0: weighted smooth sum.
    row8 = lax.broadcasted_iota(jnp.int32, (8, 128), 0)
    lane8 = lax.broadcasted_iota(jnp.int32, (8, 128), 1)
    tile = (jnp.where(row8 == 0, inter_vec, 0.0)
            + jnp.where(row8 == 1, psum_vec, 0.0)
            + jnp.where(row8 == 2, tsum_vec, 0.0)
            + jnp.where((row8 == 3) & (lane8 == 0), nll_wsum, 0.0)
            + jnp.where((row8 == 4) & (lane8 == 0), smooth_wsum, 0.0))
    out_ref[...] = tile


def sce_dice_edge_strength_loss(
    logits, labels, *,
    ignore_index=255, edge_strength_weight=4.0, edge_pool_kernel=7,
    weight_sce=2.0, weight_dice=0.25,
    smooth_factor=0.05, dice_smooth=0.05, dice_eps=1e-7,
    spatial_block_rows=None,
):
    N, C, H, W = logits.shape
    assert labels.shape == (N, H, W)
    assert C <= 128, "per-class dice partials are packed along 128 lanes"

    logits = logits.astype(jnp.float32)
    labels = labels.astype(jnp.int32)
    label_numel = float(N * H * W)

    # --- edge-strength weight map (edge detection runs on the RAW labels, incl. 255) ---
    if float(edge_strength_weight) > 1.0:
        weights = _compute_edge_weights(labels, edge_strength_weight, edge_pool_kernel)
    else:
        weights = jnp.ones((N, H, W), jnp.float32)

    # --- flatten spatial to a lane-dense (rows, 128) layout and tile the rows ---
    S = H * W
    rows = _round_up(S, 128) // 128
    rows_aligned = _round_up(rows, 8)
    if spatial_block_rows is None:
        # target roughly a 2 MiB f32 logits block: C * tr * 128 * 4 bytes
        budget_rows = max(8, (4096 // max(C, 1)) // 8 * 8)
        tr = min(rows_aligned, budget_rows)
    else:
        tr = min(rows_aligned, max(8, _round_up(spatial_block_rows, 8)))
    rows_p = _round_up(rows, tr)
    Sp = rows_p * 128
    num_tiles = rows_p // tr

    logits_f = jnp.pad(logits.reshape(N, C, S), ((0, 0), (0, 0), (0, Sp - S)))
    logits_f = logits_f.reshape(N, C, rows_p, 128)
    labels_f = jnp.pad(labels.reshape(N, S), ((0, 0), (0, Sp - S)),
                       constant_values=ignore_index).reshape(N, rows_p, 128)
    weights_f = jnp.pad(weights.reshape(N, S), ((0, 0), (0, Sp - S)),
                        constant_values=1.0).reshape(N, rows_p, 128)

    kernel = functools.partial(_sce_dice_partial_kernel, C=C, ignore_index=ignore_index)

    partials = pl.pallas_call(
        kernel,
        out_shape=jax.ShapeDtypeStruct((N, num_tiles, 8, 128), jnp.float32),
        grid=(N, num_tiles),
        in_specs=[
            pl.BlockSpec((None, C, tr, 128), lambda n, s: (n, 0, s, 0)),
            pl.BlockSpec((None, tr, 128), lambda n, s: (n, s, 0)),
            pl.BlockSpec((None, tr, 128), lambda n, s: (n, s, 0)),
        ],
        out_specs=pl.BlockSpec((None, None, 8, 128), lambda n, s: (n, s, 0, 0)),
        compiler_params=pltpu.CompilerParams(
            dimension_semantics=("parallel", "parallel"),
            vmem_limit_bytes=32 * 1024 * 1024,
        ),
    )(logits_f, labels_f, weights_f)

    # --- tiny scalar epilogue: reduce per-block partials and combine ---
    P = jnp.sum(partials, axis=(0, 1))          # (8, 128)
    inter = P[0, :C]
    psum = P[1, :C]
    tsum = P[2, :C]
    nll_sum = P[3, 0]
    smooth_sum = P[4, 0]

    eps_i = smooth_factor / C
    sce_loss = (1.0 - smooth_factor) * nll_sum + eps_i * smooth_sum   # reduction='sum'

    card = psum + tsum
    dice = (2.0 * inter + dice_smooth) / jnp.maximum(card + dice_smooth, dice_eps)
    dice_loss = jnp.sum((1.0 - dice) * (tsum > 0.0).astype(jnp.float32)) / C

    return sce_loss * weight_sce / label_numel + dice_loss * weight_dice


# -----------------------------------------------------------------------------
# Pure-JAX reference (mirrors the PyTorch forward) for a correctness self-check.
# -----------------------------------------------------------------------------
def _reference_loss(logits, labels, *, ignore_index=255, edge_strength_weight=4.0,
                    edge_pool_kernel=7, weight_sce=2.0, weight_dice=0.25,
                    smooth_factor=0.05, dice_smooth=0.05, dice_eps=1e-7):
    N, C, H, W = logits.shape
    logits = logits.astype(jnp.float32)
    logp = jax.nn.log_softmax(logits, axis=1)

    lab_f = labels.astype(jnp.float32)[:, None]                         # (N,1,H,W)
    k = (jnp.array([[-1., -1., -1.], [-1., 8., -1.], [-1., -1., -1.]],
                   jnp.float32) / 3.0)[None, None]                      # (1,1,3,3)
    conv = lax.conv_general_dilated(lab_f, k, (1, 1), ((1, 1), (1, 1)),
                                    dimension_numbers=("NCHW", "OIHW", "NCHW"))
    e0 = (conv > 0.1).astype(jnp.float32)
    r = edge_pool_kernel // 2
    pooled = lax.reduce_window(e0, -jnp.inf, lax.max,
                               (1, 1, edge_pool_kernel, edge_pool_kernel),
                               (1, 1, 1, 1),
                               ((0, 0), (0, 0), (r, r), (r, r)))
    w = jnp.where(pooled[:, 0] > 0.0, float(edge_strength_weight), 1.0)  # (N,H,W)

    pad = labels == ignore_index
    tgt = jnp.where(pad, 0, labels)
    nll = -jnp.take_along_axis(logp, tgt[:, None], axis=1)[:, 0]
    nll = jnp.where(pad, 0.0, nll)
    smooth = jnp.where(pad, 0.0, -jnp.sum(logp, axis=1))
    nll_sum = jnp.sum(nll * w)
    smooth_sum = jnp.sum(smooth * w)
    sce = (1.0 - smooth_factor) * nll_sum + (smooth_factor / C) * smooth_sum

    prob = jax.nn.softmax(logits, axis=1)
    valid = jnp.where(pad, 0.0, 1.0)
    p = prob * valid[:, None]
    onehot = (labels[:, None] == jnp.arange(C)[None, :, None, None]) & (~pad[:, None])
    t = onehot.astype(jnp.float32)
    inter = jnp.sum(p * t, axis=(0, 2, 3))
    card = jnp.sum(p, axis=(0, 2, 3)) + jnp.sum(t, axis=(0, 2, 3))
    tsum = jnp.sum(t, axis=(0, 2, 3))
    dice = (2.0 * inter + dice_smooth) / jnp.maximum(card + dice_smooth, dice_eps)
    dice_loss = jnp.sum((1.0 - dice) * (tsum > 0.0).astype(jnp.float32)) / C

    return sce * weight_sce / float(N * H * W) + dice_loss * weight_dice


if __name__ == "__main__":
    key = jax.random.PRNGKey(0)
    k_logits, k_labels, k_ignore = jax.random.split(key, 3)

    N, C, H, W = 2, 4, 64, 64
    logits = jax.random.normal(k_logits, (N, C, H, W), dtype=jnp.float32)
    labels = jax.random.randint(k_labels, (N, H, W), 0, C, dtype=jnp.int32)
    # sprinkle a few ignore_index (255) pixels to exercise the masking path
    ignore_mask = jax.random.uniform(k_ignore, (N, H, W)) < 0.1
    labels = jnp.where(ignore_mask, 255, labels)

    # small spatial block so the demo exercises the (N, spatial-tile) grid pipeline
    loss = sce_dice_edge_strength_loss(logits, labels, spatial_block_rows=16)
    loss = jax.block_until_ready(loss)
    assert bool(jnp.isfinite(loss)), f"non-finite loss: {loss}"

    ref = jax.block_until_ready(_reference_loss(logits, labels))
    assert bool(jnp.allclose(loss, ref, rtol=5e-3, atol=1e-4)), (
        f"kernel {loss} vs reference {ref}")

    print("KERNEL_OK")
</pallas_src>

<mosaic_0001>
module attributes {stable_mosaic.version = 11 : i64} {
  func.func @_edge_weight_kernel(%arg0: i32, %arg1: memref<1x64x128xi32, #tpu.memory_space<vmem>>, %arg2: memref<1x64x128xf32, #tpu.memory_space<vmem>>) attributes {dimension_semantics = [#tpu.dimension_semantics<parallel>], iteration_bounds = array<i64: 2>, scalar_prefetch = 0 : i64, scratch_operands = 0 : i64, tpu.core_type = #tpu.core_type<tc>, window_params = [{transform_indices = @transform_0, window_bounds = array<i64: 1, 64, 128>}, {transform_indices = @transform_1, window_bounds = array<i64: 1, 64, 128>}]} {
    %c0 = arith.constant 0 : index
    %c0_0 = arith.constant 0 : index
    %c0_1 = arith.constant 0 : index
    %0 = vector.load %arg1[%c0, %c0_0, %c0_1] : memref<1x64x128xi32, #tpu.memory_space<vmem>>, vector<1x64x128xi32>
    %1 = vector.shape_cast %0 : vector<1x64x128xi32> to vector<64x128xi32>
    %2 = arith.sitofp %1 : vector<64x128xi32> to vector<64x128xf32>
    %c1_i32 = arith.constant 1 : i32
    %3 = tpu.dynamic_rotate %2 by %c1_i32 dim 0 : vector<64x128xf32>, i32 -> vector<64x128xf32>
    %4 = tpu.iota {dimensions = array<i32: 0>} : vector<64x128xi32>
    %c1_i32_2 = arith.constant 1 : i32
    %5 = vector.broadcast %c1_i32_2 : i32 to vector<64x128xi32>
    %6 = arith.cmpi sge, %4, %5 : vector<64x128xi32>
    %cst = arith.constant 0.000000e+00 : f32
    %7 = vector.broadcast %cst : f32 to vector<64x128xf32>
    %8 = arith.select %6, %3, %7 : vector<64x128xi1>, vector<64x128xf32>
    %9 = arith.addf %2, %8 : vector<64x128xf32>
    %c63_i32 = arith.constant 63 : i32
    %10 = tpu.dynamic_rotate %2 by %c63_i32 dim 0 : vector<64x128xf32>, i32 -> vector<64x128xf32>
    %11 = tpu.iota {dimensions = array<i32: 0>} : vector<64x128xi32>
    %c63_i32_3 = arith.constant 63 : i32
    %12 = vector.broadcast %c63_i32_3 : i32 to vector<64x128xi32>
    %13 = arith.cmpi slt, %11, %12 : vector<64x128xi32>
    %cst_4 = arith.constant 0.000000e+00 : f32
    %14 = vector.broadcast %cst_4 : f32 to vector<64x128xf32>
    %15 = arith.select %13, %10, %14 : vector<64x128xi1>, vector<64x128xf32>
    %16 = arith.addf %9, %15 : vector<64x128xf32>
    %c1_i32_5 = arith.constant 1 : i32
    %17 = tpu.dynamic_rotate %16 by %c1_i32_5 dim 1 : vector<64x128xf32>, i32 -> vector<64x128xf32>
    %18 = tpu.iota {dimensions = array<i32: 1>} : vector<64x128xi32>
    %c1_i32_6 = arith.constant 1 : i32
    %19 = vector.broadcast %c1_i32_6 : i32 to vector<64x128xi32>
    %20 = arith.cmpi sge, %18, %19 : vector<64x128xi32>
    %cst_7 = arith.constant 0.000000e+00 : f32
    %21 = vector.broadcast %cst_7 : f32 to vector<64x128xf32>
    %22 = arith.select %20, %17, %21 : vector<64x128xi1>, vector<64x128xf32>
    %23 = arith.addf %16, %22 : vector<64x128xf32>
    %c127_i32 = arith.constant 127 : i32
    %24 = tpu.dynamic_rotate %16 by %c127_i32 dim 1 : vector<64x128xf32>, i32 -> vector<64x128xf32>
    %25 = tpu.iota {dimensions = array<i32: 1>} : vector<64x128xi32>
    %c127_i32_8 = arith.constant 127 : i32
    %26 = vector.broadcast %c127_i32_8 : i32 to vector<64x128xi32>
    %27 = arith.cmpi slt, %25, %26 : vector<64x128xi32>
    %cst_9 = arith.constant 0.000000e+00 : f32
    %28 = vector.broadcast %cst_9 : f32 to vector<64x128xf32>
    %29 = arith.select %27, %24, %28 : vector<64x128xi1>, vector<64x128xf32>
    %30 = arith.addf %23, %29 : vector<64x128xf32>
    %cst_10 = arith.constant 9.000000e+00 : f32
    %31 = vector.broadcast %cst_10 : f32 to vector<64x128xf32>
    %32 = arith.mulf %31, %2 : vector<64x128xf32>
    %33 = arith.subf %32, %30 : vector<64x128xf32>
    %cst_11 = arith.constant 0.333333343 : f32
    %34 = vector.broadcast %cst_11 : f32 to vector<64x128xf32>
    %35 = arith.mulf %33, %34 : vector<64x128xf32>
    %cst_12 = arith.constant 1.000000e-01 : f32
    %36 = vector.broadcast %cst_12 : f32 to vector<64x128xf32>
    %37 = arith.cmpf ogt, %35, %36 : vector<64x128xf32>
    %cst_13 = arith.constant 1.000000e+00 : f32
    %cst_14 = arith.constant 0.000000e+00 : f32
    %38 = vector.broadcast %cst_13 : f32 to vector<64x128xf32>
    %39 = vector.broadcast %cst_14 : f32 to vector<64x128xf32>
    %40 = arith.select %37, %38, %39 : vector<64x128xi1>, vector<64x128xf32>
    %c1_i32_15 = arith.constant 1 : i32
    %41 = tpu.dynamic_rotate %40 by %c1_i32_15 dim 0 : vector<64x128xf32>, i32 -> vector<64x128xf32>
    %42 = tpu.iota {dimensions = array<i32: 0>} : vector<64x128xi32>
    %c1_i32_16 = arith.constant 1 : i32
    %43 = vector.broadcast %c1_i32_16 : i32 to vector<64x128xi32>
    %44 = arith.cmpi sge, %42, %43 : vector<64x128xi32>
    %cst_17 = arith.constant 0.000000e+00 : f32
    %45 = vector.broadcast %cst_17 : f32 to vector<64x128xf32>
    %46 = arith.select %44, %41, %45 : vector<64x128xi1>, vector<64x128xf32>
    %47 = arith.addf %40, %46 : vector<64x128xf32>
    %c63_i32_18 = arith.constant 63 : i32
    %48 = tpu.dynamic_rotate %40 by %c63_i32_18 dim 0 : vector<64x128xf32>, i32 -> vector<64x128xf32>
    %49 = tpu.iota {dimensions = array<i32: 0>} : vector<64x128xi32>
    %c63_i32_19 = arith.constant 63 : i32
    %50 = vector.broadcast %c63_i32_19 : i32 to vector<64x128xi32>
    %51 = arith.cmpi slt, %49, %50 : vector<64x128xi32>
    %cst_20 = arith.constant 0.000000e+00 : f32
    %52 = vector.broadcast %cst_20 : f32 to vector<64x128xf32>
    %53 = arith.select %51, %48, %52 : vector<64x128xi1>, vector<64x128xf32>
    %54 = arith.addf %47, %53 : vector<64x128xf32>
    %c2_i32 = arith.constant 2 : i32
    %55 = tpu.dynamic_rotate %40 by %c2_i32 dim 0 : vector<64x128xf32>, i32 -> vector<64x128xf32>
    %56 = tpu.iota {dimensions = array<i32: 0>} : vector<64x128xi32>
    %c2_i32_21 = arith.constant 2 : i32
    %57 = vector.broadcast %c2_i32_21 : i32 to vector<64x128xi32>
    %58 = arith.cmpi sge, %56, %57 : vector<64x128xi32>
    %cst_22 = arith.constant 0.000000e+00 : f32
    %59 = vector.broadcast %cst_22 : f32 to vector<64x128xf32>
    %60 = arith.select %58, %55, %59 : vector<64x128xi1>, vector<64x128xf32>
    %61 = arith.addf %54, %60 : vector<64x128xf32>
    %c62_i32 = arith.constant 62 : i32
    %62 = tpu.dynamic_rotate %40 by %c62_i32 dim 0 : vector<64x128xf32>, i32 -> vector<64x128xf32>
    %63 = tpu.iota {dimensions = array<i32: 0>} : vector<64x128xi32>
    %c62_i32_23 = arith.constant 62 : i32
    %64 = vector.broadcast %c62_i32_23 : i32 to vector<64x128xi32>
    %65 = arith.cmpi slt, %63, %64 : vector<64x128xi32>
    %cst_24 = arith.constant 0.000000e+00 : f32
    %66 = vector.broadcast %cst_24 : f32 to vector<64x128xf32>
    %67 = arith.select %65, %62, %66 : vector<64x128xi1>, vector<64x128xf32>
    %68 = arith.addf %61, %67 : vector<64x128xf32>
    %c3_i32 = arith.constant 3 : i32
    %69 = tpu.dynamic_rotate %40 by %c3_i32 dim 0 : vector<64x128xf32>, i32 -> vector<64x128xf32>
    %70 = tpu.iota {dimensions = array<i32: 0>} : vector<64x128xi32>
    %c3_i32_25 = arith.constant 3 : i32
    %71 = vector.broadcast %c3_i32_25 : i32 to vector<64x128xi32>
    %72 = arith.cmpi sge, %70, %71 : vector<64x128xi32>
    %cst_26 = arith.constant 0.000000e+00 : f32
    %73 = vector.broadcast %cst_26 : f32 to vector<64x128xf32>
    %74 = arith.select %72, %69, %73 : vector<64x128xi1>, vector<64x128xf32>
    %75 = arith.addf %68, %74 : vector<64x128xf32>
    %c61_i32 = arith.constant 61 : i32
    %76 = tpu.dynamic_rotate %40 by %c61_i32 dim 0 : vector<64x128xf32>, i32 -> vector<64x128xf32>
    %77 = tpu.iota {dimensions = array<i32: 0>} : vector<64x128xi32>
    %c61_i32_27 = arith.constant 61 : i32
    %78 = vector.broadcast %c61_i32_27 : i32 to vector<64x128xi32>
    %79 = arith.cmpi slt, %77, %78 : vector<64x128xi32>
    %cst_28 = arith.constant 0.000000e+00 : f32
    %80 = vector.broadcast %cst_28 : f32 to vector<64x128xf32>
    %81 = arith.select %79, %76, %80 : vector<64x128xi1>, vector<64x128xf32>
    %82 = arith.addf %75, %81 : vector<64x128xf32>
    %c1_i32_29 = arith.constant 1 : i32
    %83 = tpu.dynamic_rotate %82 by %c1_i32_29 dim 1 : vector<64x128xf32>, i32 -> vector<64x128xf32>
    %84 = tpu.iota {dimensions = array<i32: 1>} : vector<64x128xi32>
    %c1_i32_30 = arith.constant 1 : i32
    %85 = vector.broadcast %c1_i32_30 : i32 to vector<64x128xi32>
    %86 = arith.cmpi sge, %84, %85 : vector<64x128xi32>
    %cst_31 = arith.constant 0.000000e+00 : f32
    %87 = vector.broadcast %cst_31 : f32 to vector<64x128xf32>
    %88 = arith.select %86, %83, %87 : vector<64x128xi1>, vector<64x128xf32>
    %89 = arith.addf %82, %88 : vector<64x128xf32>
    %c127_i32_32 = arith.constant 127 : i32
    %90 = tpu.dynamic_rotate %82 by %c127_i32_32 dim 1 : vector<64x128xf32>, i32 -> vector<64x128xf32>
    %91 = tpu.iota {dimensions = array<i32: 1>} : vector<64x128xi32>
    %c127_i32_33 = arith.constant 127 : i32
    %92 = vector.broadcast %c127_i32_33 : i32 to vector<64x128xi32>
    %93 = arith.cmpi slt, %91, %92 : vector<64x128xi32>
    %cst_34 = arith.constant 0.000000e+00 : f32
    %94 = vector.broadcast %cst_34 : f32 to vector<64x128xf32>
    %95 = arith.select %93, %90, %94 : vector<64x128xi1>, vector<64x128xf32>
    %96 = arith.addf %89, %95 : vector<64x128xf32>
    %c2_i32_35 = arith.constant 2 : i32
    %97 = tpu.dynamic_rotate %82 by %c2_i32_35 dim 1 : vector<64x128xf32>, i32 -> vector<64x128xf32>
    %98 = tpu.iota {dimensions = array<i32: 1>} : vector<64x128xi32>
    %c2_i32_36 = arith.constant 2 : i32
    %99 = vector.broadcast %c2_i32_36 : i32 to vector<64x128xi32>
    %100 = arith.cmpi sge, %98, %99 : vector<64x128xi32>
    %cst_37 = arith.constant 0.000000e+00 : f32
    %101 = vector.broadcast %cst_37 : f32 to vector<64x128xf32>
    %102 = arith.select %100, %97, %101 : vector<64x128xi1>, vector<64x128xf32>
    %103 = arith.addf %96, %102 : vector<64x128xf32>
    %c126_i32 = arith.constant 126 : i32
    %104 = tpu.dynamic_rotate %82 by %c126_i32 dim 1 : vector<64x128xf32>, i32 -> vector<64x128xf32>
    %105 = tpu.iota {dimensions = array<i32: 1>} : vector<64x128xi32>
    %c126_i32_38 = arith.constant 126 : i32
    %106 = vector.broadcast %c126_i32_38 : i32 to vector<64x128xi32>
    %107 = arith.cmpi slt, %105, %106 : vector<64x128xi32>
    %cst_39 = arith.constant 0.000000e+00 : f32
    %108 = vector.broadcast %cst_39 : f32 to vector<64x128xf32>
    %109 = arith.select %107, %104, %108 : vector<64x128xi1>, vector<64x128xf32>
    %110 = arith.addf %103, %109 : vector<64x128xf32>
    %c3_i32_40 = arith.constant 3 : i32
    %111 = tpu.dynamic_rotate %82 by %c3_i32_40 dim 1 : vector<64x128xf32>, i32 -> vector<64x128xf32>
    %112 = tpu.iota {dimensions = array<i32: 1>} : vector<64x128xi32>
    %c3_i32_41 = arith.constant 3 : i32
    %113 = vector.broadcast %c3_i32_41 : i32 to vector<64x128xi32>
    %114 = arith.cmpi sge, %112, %113 : vector<64x128xi32>
    %cst_42 = arith.constant 0.000000e+00 : f32
    %115 = vector.broadcast %cst_42 : f32 to vector<64x128xf32>
    %116 = arith.select %114, %111, %115 : vector<64x128xi1>, vector<64x128xf32>
    %117 = arith.addf %110, %116 : vector<64x128xf32>
    %c125_i32 = arith.constant 125 : i32
    %118 = tpu.dynamic_rotate %82 by %c125_i32 dim 1 : vector<64x128xf32>, i32 -> vector<64x128xf32>
    %119 = tpu.iota {dimensions = array<i32: 1>} : vector<64x128xi32>
    %c125_i32_43 = arith.constant 125 : i32
    %120 = vector.broadcast %c125_i32_43 : i32 to vector<64x128xi32>
    %121 = arith.cmpi slt, %119, %120 : vector<64x128xi32>
    %cst_44 = arith.constant 0.000000e+00 : f32
    %122 = vector.broadcast %cst_44 : f32 to vector<64x128xf32>
    %123 = arith.select %121, %118, %122 : vector<64x128xi1>, vector<64x128xf32>
    %124 = arith.addf %117, %123 : vector<64x128xf32>
    %cst_45 = arith.constant 0.000000e+00 : f32
    %125 = vector.broadcast %cst_45 : f32 to vector<64x128xf32>
    %126 = arith.cmpf ogt, %124, %125 : vector<64x128xf32>
    %cst_46 = arith.constant 4.000000e+00 : f32
    %cst_47 = arith.constant 1.000000e+00 : f32
    %127 = vector.broadcast %cst_46 : f32 to vector<64x128xf32>
    %128 = vector.broadcast %cst_47 : f32 to vector<64x128xf32>
    %129 = arith.select %126, %127, %128 : vector<64x128xi1>, vector<64x128xf32>
    %c0_48 = arith.constant 0 : index
    %c0_49 = arith.constant 0 : index
    %c0_50 = arith.constant 0 : index
    %130 = vector.load %arg2[%c0_48, %c0_49, %c0_50] : memref<1x64x128xf32, #tpu.memory_space<vmem>>, vector<1x64x128xf32>
    %131 = vector.shape_cast %130 : vector<1x64x128xf32> to vector<64x128xf32>
    %132 = vector.shape_cast %129 : vector<64x128xf32> to vector<1x64x128xf32>
    tpu.vector_store %arg2[%c0_48, %c0_49, %c0_50], %132 {strides = array<i32>} : memref<1x64x128xf32, #tpu.memory_space<vmem>>, vector<1x64x128xf32>,
    return
  }
  func.func @transform_0(%arg0: i32) -> (i32, i32, i32) {
    %c0_i32 = arith.constant 0 : i32
    %c0_i32_0 = arith.constant 0 : i32
    %c0_i32_1 = arith.constant 0 : i32
    return %arg0, %c0_i32, %c0_i32_0 : i32, i32, i32
  }
  func.func @transform_1(%arg0: i32) -> (i32, i32, i32) {
    %c0_i32 = arith.constant 0 : i32
    %c0_i32_0 = arith.constant 0 : i32
    %c0_i32_1 = arith.constant 0 : i32
    return %arg0, %c0_i32, %c0_i32_0 : i32, i32, i32
  }
}

</mosaic_0001>

<llo_original>
// kernel: tpu_custom_call.1
$region0: #{tpu_custom_call.1}
  #allocation0 [shape = 'u32[]', space=smem, size = 0x4, offset = 0x4, fixed_abs, tag = 'smem constant byte address 0x4 - core index']
  #allocation1 [shape = 'u32[144,128]{1,0:T(1,128)}', space=vmem, size = 0x12000, scoped, tag = 'internal scratch']
  %s0 = inlined_call_operand.hbm [shape: s32[2,64,128], index: 0, kind: input, shape index: {}]
  %s1 = inlined_call_operand.hbm [shape: f32[2,64,128], index: 1, kind: output, shape index: {}]
  %s2 = sld [smem:[#allocation0]]
  $region41: #{tpu_custom_call.1} parent=0
    _
  %s4 = ssub.s32 1, %s2
  %s5 = scalar_select 0, %s4, %s2
  $region1: #{tpu_custom_call.1} parent=0
    #allocation2 [shape = 'u8[65536]{0}', space=vmem, size = 0x10000, scoped, tag = 'input window, operand 0']
    #allocation3 [shape = 's32[2]{0}', space=sflag, size = 0x8, scoped, tag = 'scoped memory for tpu_custom_call.1']
    #allocation4 [shape = 's32[2]{0}', space=sflag, size = 0x8, scoped, tag = 'scoped memory for tpu_custom_call.1']
    #allocation5 [shape = 'u8[65536]{0}', space=vmem, size = 0x10000, scoped, tag = 'output window, operand 0']
    %6 = vsyncpa [#allocation3], 0
    %s7 = scalar_lea.sflag [#allocation3], 1
    %8 = vsyncpa %s7, 0
    %9 = vsyncpa [#allocation4], 0
    %s10 = scalar_lea.sflag [#allocation4], 1
    %11 = vsyncpa %s10, 0
    loop: start=0, step=1, limit=4
    $region2: #{tpu_custom_call.1} parent=1 // loop_pre_header
      _
    $region3: #{tpu_custom_call.1} parent=1 // loop_header
      %s13 = sphi 0, %s17
      %p14 = scmp.ge.s32.totalorder %s13, 4
      %s23 = sphi 0, %s25
      %s26 = sphi 0, %s23
      %s27 = sphi 0, %s26
      %s43 = sphi 0, %s27
      %s49 = sphi 0, %s51
      %s52 = sphi 0, %s49
      %s53 = sphi 0, %s52
      %s69 = sphi 0, %s53
    $region4: #{tpu_custom_call.1} parent=1 // loop_header_branch
      %16 = sbr.rel (%p14) target = $region8
    $region5: #{tpu_custom_call.1} parent=1 // loop_body
      %s18 = ssub.s32 %s13, 1
      %s19 = ssub.s32 %s13, 2
      %s20 = sadd.s32 %s13, 1
      %s21 = ssub.s32 %s13, %s20
      %p22 = scmp.eq.s32.totalorder %s21, 0
      %s24 = sadd.s32 %s23, 1
      %s25 = scalar_select %p22, %s23, %s24
      %p28 = pneg %p22
      %p29 = scmp.eq.s32.totalorder %s13, 1
      %p30 = por %p28, %p29
      %p31 = scmp.ne.s32.totalorder %s23, %s26
      %p32 = scmp.eq.s32.totalorder %s13, 0
      %p33 = por %p31, %p32
      %p34 = scmp.ne.s32.totalorder %s23, %s26
      %p35 = scmp.eq.s32.totalorder %s18, 1
      %p36 = por %p34, %p35
      %p37 = scmp.ne.s32.totalorder %s26, %s27
      %p38 = scmp.eq.s32.totalorder %s18, 0
      %p39 = por %p37, %p38
      %p40 = scmp.ne.s32.totalorder %s26, %s27
      %p41 = scmp.eq.s32.totalorder %s19, 1
      %p42 = por %p40, %p41
      %p44 = scmp.ne.s32.totalorder %s27, %s43
      %p45 = scmp.eq.s32.totalorder %s19, 0
      %p46 = por %p44, %p45
      %s47 = ssub.s32 %s13, %s20
      %p48 = scmp.eq.s32.totalorder %s47, 0
      %s50 = sadd.s32 %s49, 1
      %s51 = scalar_select %p48, %s49, %s50
      %p54 = pneg %p48
      %p55 = scmp.eq.s32.totalorder %s13, 1
      %p56 = por %p54, %p55
      %p57 = scmp.ne.s32.totalorder %s49, %s52
      %p58 = scmp.eq.s32.totalorder %s13, 0
      %p59 = por %p57, %p58
      %p60 = scmp.ne.s32.totalorder %s49, %s52
      %p61 = scmp.eq.s32.totalorder %s18, 1
      %p62 = por %p60, %p61
      %p63 = scmp.ne.s32.totalorder %s52, %s53
      %p64 = scmp.eq.s32.totalorder %s18, 0
      %p65 = por %p63, %p64
      %p66 = scmp.ne.s32.totalorder %s52, %s53
      %p67 = scmp.eq.s32.totalorder %s19, 1
      %p68 = por %p66, %p67
      %p70 = scmp.ne.s32.totalorder %s53, %s69
      %p71 = scmp.eq.s32.totalorder %s19, 0
      %p72 = por %p70, %p71
      %p73 = scmp.le.s32.totalorder 1, %s13
      %p74 = scmp.lt.s32.totalorder %s13, 3
      %p75 = pnand %p73, %p74
      %p76 = pneg %p75
      // Predicated region
      $region9: #{tpu_custom_call.1} parent=5 // pred_check
        _
      $region10: #{tpu_custom_call.1} parent=5 // pred_check_branch
        %78 = sbr.rel (%p75) target = $region12
      $region11: #{tpu_custom_call.1} parent=5 // pred_region
        %s79 = ssub.s32 %s13, 1
      $region12: #{tpu_custom_call.1} parent=5 // pred_fallthru
        _
      %p80 = scmp.lt.s32.totalorder %s13, 2
      // Predicated region
      $region13: #{tpu_custom_call.1} parent=5 // pred_check
        %p81 = pneg %p80
      $region14: #{tpu_custom_call.1} parent=5 // pred_check_branch
        %83 = sbr.rel (%p81) target = $region16
      $region15: #{tpu_custom_call.1} parent=5 // pred_region
        // Predicated region
        $region17: #{tpu_custom_call.1} parent=15 // pred_check
          %p84 = pneg %p33
        $region18: #{tpu_custom_call.1} parent=15 // pred_check_branch
          %86 = sbr.rel (%p84) target = $region20
        $region19: #{tpu_custom_call.1} parent=15 // pred_region
          %s87 = sand.u32 %s23, 1
          %s88 = scalar_lea.sflag [#allocation3], %s87
          %s89 = sand.u32 %s23, 1
          %s90 = smul.addr %s89, 64
          %s91 = scalar_lea.vmem [#allocation2], %s90
          %s93 = ssub.s32 1024, 1024
          %94 = vsyncadd %s88, %s93
          %s95 = smul.addr %s13, 8
          %s96 = smul.addr %s95, 128
          %s97 = scalar_lea.hbm %s0, %s96
          %s98 = sshll.u32 %s91, 4
          %s99 = int_to_ptr.vmem [resolvable:$true] %s98
          %104 = dma.hbm_to_vmem [thread:$0]  %s97, 1024, %s99, %s88, 128, 128, 8
        $region20: #{tpu_custom_call.1} parent=15 // pred_fallthru
          _
      $region16: #{tpu_custom_call.1} parent=5 // pred_fallthru
        _
      %p105 = scmp.le.s32.totalorder 1, %s13
      %p106 = scmp.lt.s32.totalorder %s13, 3
      %p107 = pnand %p105, %p106
      %p108 = pneg %p107
      // Predicated region
      $region21: #{tpu_custom_call.1} parent=5 // pred_check
        _
      $region22: #{tpu_custom_call.1} parent=5 // pred_check_branch
        %110 = sbr.rel (%p107) target = $region24
      $region23: #{tpu_custom_call.1} parent=5 // pred_region
        %s111 = ssub.s32 %s13, 1
        %s112 = sand.u32 %s26, 1
        %s113 = scalar_lea.sflag [#allocation3], %s112
        %s114 = sand.u32 %s26, 1
        %s115 = smul.addr %s114, 64
        %s116 = scalar_lea.vmem [#allocation2], %s115
        // Predicated region
        $region25: #{tpu_custom_call.1} parent=23 // pred_check
          %p117 = pneg %p39
        $region26: #{tpu_custom_call.1} parent=23 // pred_check_branch
          %119 = sbr.rel (%p117) target = $region28
        $region27: #{tpu_custom_call.1} parent=23 // pred_region
          %120 = dma.done %s113, 1024
        $region28: #{tpu_custom_call.1} parent=23 // pred_fallthru
          _
        %s121 = sand.u32 %s26, 1
        %s122 = scalar_lea.sflag [#allocation3], %s121
        %s123 = sand.u32 %s26, 1
        %s124 = smul.addr %s123, 64
        %s125 = scalar_lea.vmem [#allocation2], %s124
        %p126 = pneg %p39
        %p127 = pneg %p36
        %p128 = pneg %p65
        %p129 = pneg %p62
        %s130 = sand.u32 %s52, 1
        %s131 = scalar_lea.sflag [#allocation4], %s130
        %s132 = sand.u32 %s52, 1
        %s133 = smul.addr %s132, 64
        %s134 = scalar_lea.vmem [#allocation5], %s133
        %v135 = vld [vmem:[%s116] sm:$0xff]
        %v136 = vld [vmem:[%s116 + $0x8] sm:$0xff]
        %v137 = vld [vmem:[%s116 + $0x10] sm:$0xff]
        %v138 = vld [vmem:[%s116 + $0x18] sm:$0xff]
        %v139 = vld [vmem:[%s116 + $0x20] sm:$0xff]
        %v140 = vld [vmem:[%s116 + $0x28] sm:$0xff]
        %v141 = vld [vmem:[%s116 + $0x30] sm:$0xff]
        %v142 = vld [vmem:[%s116 + $0x38] sm:$0xff]
        %v143 = vcvt.s32.f32 %v135
        %v144 = vcvt.s32.f32 %v136
        %v145 = vcvt.s32.f32 %v137
        %v146 = vcvt.s32.f32 %v138
        %v147 = vcvt.s32.f32 %v139
        %v148 = vcvt.s32.f32 %v140
        %v149 = vcvt.s32.f32 %v141
        %v150 = vcvt.s32.f32 %v142
        %v151 = vrot.slane %v143, 7
        %v152 = vrot.slane %v144, 7
        %v153 = vrot.slane %v145, 7
        %v154 = vrot.slane %v146, 7
        %v155 = vrot.slane %v147, 7
        %v156 = vrot.slane %v148, 7
        %v157 = vrot.slane %v149, 7
        %v158 = vrot.slane %v150, 7
        %v159 = vlaneseq
        %v160 = vshrl.u32 %v159, 7
        %vm161 = vcmp.lt.s32.totalorder %v160, 1
        %v162 = vsel %vm161, %v157, %v158
        %v163 = vsel %vm161, %v156, %v157
        %v164 = vsel %vm161, %v155, %v156
        %v165 = vsel %vm161, %v154, %v155
        %v166 = vsel %vm161, %v153, %v154
        %v167 = vsel %vm161, %v152, %v153
        %v168 = vsel %vm161, %v151, %v152
        %v169 = vsel %vm161, %v158, %v151
        %v170 = vadd.s32 %v160, 8
        %v171 = vadd.s32 %v160, 16
        %v172 = vadd.s32 %v160, 24
        %v173 = vadd.s32 %v160, 32
        %v174 = vadd.s32 %v160, 40
        %v175 = vadd.s32 %v160, 48
        %v176 = vadd.s32 %v160, 56
        %vm177 = vcmp.ge.s32.totalorder %v160, 1
        %vm178 = vcmp.ge.s32.totalorder %v170, 1
        %vm179 = vcmp.ge.s32.totalorder %v171, 1
        %vm180 = vcmp.ge.s32.totalorder %v172, 1
        %vm181 = vcmp.ge.s32.totalorder %v173, 1
        %vm182 = vcmp.ge.s32.totalorder %v174, 1
        %vm183 = vcmp.ge.s32.totalorder %v175, 1
        %vm184 = vcmp.ge.s32.totalorder %v176, 1
        %v185 = vsel %vm177, %v169, 0.0
        %v186 = vsel %vm178, %v168, 0.0
        %v187 = vsel %vm179, %v167, 0.0
        %v188 = vsel %vm180, %v166, 0.0
        %v189 = vsel %vm181, %v165, 0.0
        %v190 = vsel %vm182, %v164, 0.0
        %v191 = vsel %vm183, %v163, 0.0
        %v192 = vsel %vm184, %v162, 0.0
        %v193 = vadd.f32 %v143, %v185
        %v194 = vadd.f32 %v144, %v186
        %v195 = vadd.f32 %v145, %v187
        %v196 = vadd.f32 %v146, %v188
        %v197 = vadd.f32 %v147, %v189
        %v198 = vadd.f32 %v148, %v190
        %v199 = vadd.f32 %v149, %v191
        %v200 = vadd.f32 %v150, %v192
        %v201 = vrot.slane %v143, 1
        %v202 = vrot.slane %v144, 1
        %v203 = vrot.slane %v145, 1
        %v204 = vrot.slane %v146, 1
        %v205 = vrot.slane %v147, 1
        %v206 = vrot.slane %v148, 1
        %v207 = vrot.slane %v149, 1
        %v208 = vrot.slane %v150, 1
        %vm209 = vcmp.lt.s32.totalorder %v160, 7
        %v210 = vsel %vm209, %v207, %v208
        %v211 = vsel %vm209, %v206, %v207
        %v212 = vsel %vm209, %v205, %v206
        %v213 = vsel %vm209, %v204, %v205
        %v214 = vsel %vm209, %v203, %v204
        %v215 = vsel %vm209, %v202, %v203
        %v216 = vsel %vm209, %v201, %v202
        %v217 = vsel %vm209, %v208, %v201
        %vm218 = vcmp.lt.s32.totalorder %v160, 63
        %vm219 = vcmp.lt.s32.totalorder %v170, 63
        %vm220 = vcmp.lt.s32.totalorder %v171, 63
        %vm221 = vcmp.lt.s32.totalorder %v172, 63
        %vm222 = vcmp.lt.s32.totalorder %v173, 63
        %vm223 = vcmp.lt.s32.totalorder %v174, 63
        %vm224 = vcmp.lt.s32.totalorder %v175, 63
        %vm225 = vcmp.lt.s32.totalorder %v176, 63
        %v226 = vsel %vm218, %v216, 0.0
        %v227 = vsel %vm219, %v215, 0.0
        %v228 = vsel %vm220, %v214, 0.0
        %v229 = vsel %vm221, %v213, 0.0
        %v230 = vsel %vm222, %v212, 0.0
        %v231 = vsel %vm223, %v211, 0.0
        %v232 = vsel %vm224, %v210, 0.0
        %v233 = vsel %vm225, %v217, 0.0
        %v234 = vadd.f32 %v193, %v226
        %v235 = vadd.f32 %v194, %v227
        %v236 = vadd.f32 %v195, %v228
        %v237 = vadd.f32 %v196, %v229
        %v238 = vadd.f32 %v197, %v230
        %v239 = vadd.f32 %v198, %v231
        %v240 = vadd.f32 %v199, %v232
        %v241 = vadd.f32 %v200, %v233
        %242 = vrot.lane.b32.xlu0 %v234, 1
        %v243 = vpop.permute.xlu0 %242
        %244 = vrot.lane.b32.xlu0 %v235, 1
        %v245 = vpop.permute.xlu0 %244
        %246 = vrot.lane.b32.xlu0 %v236, 1
        %v247 = vpop.permute.xlu0 %246
        %248 = vrot.lane.b32.xlu0 %v237, 1
        %v249 = vpop.permute.xlu0 %248
        %250 = vrot.lane.b32.xlu0 %v238, 1
        %v251 = vpop.permute.xlu0 %250
        %252 = vrot.lane.b32.xlu0 %v239, 1
        %v253 = vpop.permute.xlu0 %252
        %254 = vrot.lane.b32.xlu0 %v240, 1
        %v255 = vpop.permute.xlu0 %254
        %256 = vrot.lane.b32.xlu0 %v241, 1
        %v257 = vpop.permute.xlu0 %256
        %v258 = vlaneseq
        %v259 = vand.u32 %v258, 127
        %vm260 = vcmp.ge.s32.totalorder %v259, 1
        %v261 = vsel %vm260, %v243, 0.0
        %v262 = vsel %vm260, %v245, 0.0
        %v263 = vsel %vm260, %v247, 0.0
        %v264 = vsel %vm260, %v249, 0.0
        %v265 = vsel %vm260, %v251, 0.0
        %v266 = vsel %vm260, %v253, 0.0
        %v267 = vsel %vm260, %v255, 0.0
        %v268 = vsel %vm260, %v257, 0.0
        %v269 = vadd.f32 %v234, %v261
        %v270 = vadd.f32 %v235, %v262
        %v271 = vadd.f32 %v236, %v263
        %v272 = vadd.f32 %v237, %v264
        %v273 = vadd.f32 %v238, %v265
        %v274 = vadd.f32 %v239, %v266
        %v275 = vadd.f32 %v240, %v267
        %v276 = vadd.f32 %v241, %v268
        %277 = vrot.lane.b32.xlu0 %v234, 127
        %v278 = vpop.permute.xlu0 %277
        %279 = vrot.lane.b32.xlu0 %v235, 127
        %v280 = vpop.permute.xlu0 %279
        %281 = vrot.lane.b32.xlu0 %v236, 127
        %v282 = vpop.permute.xlu0 %281
        %283 = vrot.lane.b32.xlu0 %v237, 127
        %v284 = vpop.permute.xlu0 %283
        %285 = vrot.lane.b32.xlu0 %v238, 127
        %v286 = vpop.permute.xlu0 %285
        %287 = vrot.lane.b32.xlu0 %v239, 127
        %v288 = vpop.permute.xlu0 %287
        %289 = vrot.lane.b32.xlu0 %v240, 127
        %v290 = vpop.permute.xlu0 %289
        %291 = vrot.lane.b32.xlu0 %v241, 127
        %v292 = vpop.permute.xlu0 %291
        %vm293 = vcmp.lt.s32.totalorder %v259, 127
        %v294 = vsel %vm293, %v278, 0.0
        %v295 = vsel %vm293, %v280, 0.0
        %v296 = vsel %vm293, %v282, 0.0
        %v297 = vsel %vm293, %v284, 0.0
        %v298 = vsel %vm293, %v286, 0.0
        %v299 = vsel %vm293, %v288, 0.0
        %v300 = vsel %vm293, %v290, 0.0
        %v301 = vsel %vm293, %v292, 0.0
        %v302 = vadd.f32 %v269, %v294
        %v303 = vadd.f32 %v270, %v295
        %v304 = vadd.f32 %v271, %v296
        %v305 = vadd.f32 %v272, %v297
        %v306 = vadd.f32 %v273, %v298
        %v307 = vadd.f32 %v274, %v299
        %v308 = vadd.f32 %v275, %v300
        %v309 = vadd.f32 %v276, %v301
        %v310 = vmul.f32 %v143, 9.0
        %v311 = vmul.f32 %v144, 9.0
        %v312 = vmul.f32 %v145, 9.0
        %v313 = vmul.f32 %v146, 9.0
        %v314 = vmul.f32 %v147, 9.0
        %v315 = vmul.f32 %v148, 9.0
        %v316 = vmul.f32 %v149, 9.0
        %v317 = vmul.f32 %v150, 9.0
        %v318 = vsub.f32 %v310, %v302
        %v319 = vsub.f32 %v311, %v303
        %v320 = vsub.f32 %v312, %v304
        %v321 = vsub.f32 %v313, %v305
        %v322 = vsub.f32 %v314, %v306
        %v323 = vsub.f32 %v315, %v307
        %v324 = vsub.f32 %v316, %v308
        %v325 = vsub.f32 %v317, %v309
        %v326 = vmul.f32 %v318, 0.33333334
        %v327 = vmul.f32 %v319, 0.33333334
        %v328 = vmul.f32 %v320, 0.33333334
        %v329 = vmul.f32 %v321, 0.33333334
        %v330 = vmul.f32 %v322, 0.33333334
        %v331 = vmul.f32 %v323, 0.33333334
        %v332 = vmul.f32 %v324, 0.33333334
        %v333 = vmul.f32 %v325, 0.33333334
        %vm334 = vcmp.gt.f32.partialorder %v326, 0.1
        %vm335 = vcmp.gt.f32.partialorder %v327, 0.1
        %vm336 = vcmp.gt.f32.partialorder %v328, 0.1
        %vm337 = vcmp.gt.f32.partialorder %v329, 0.1
        %vm338 = vcmp.gt.f32.partialorder %v330, 0.1
        %vm339 = vcmp.gt.f32.partialorder %v331, 0.1
        %vm340 = vcmp.gt.f32.partialorder %v332, 0.1
        %vm341 = vcmp.gt.f32.partialorder %v333, 0.1
        %v342 = vsel %vm334, 1.0, 0.0
        %v343 = vsel %vm335, 1.0, 0.0
        %v344 = vsel %vm336, 1.0, 0.0
        %v345 = vsel %vm337, 1.0, 0.0
        %v346 = vsel %vm338, 1.0, 0.0
        %v347 = vsel %vm339, 1.0, 0.0
        %v348 = vsel %vm340, 1.0, 0.0
        %v349 = vsel %vm341, 1.0, 0.0
        %v350 = vrot.slane %v342, 7
        %v351 = vrot.slane %v343, 7
        %v352 = vrot.slane %v344, 7
        %v353 = vrot.slane %v345, 7
        %v354 = vrot.slane %v346, 7
        %v355 = vrot.slane %v347, 7
        %v356 = vrot.slane %v348, 7
        %v357 = vrot.slane %v349, 7
        %v358 = vsel %vm161, %v356, %v357
        %v359 = vsel %vm161, %v355, %v356
        %v360 = vsel %vm161, %v354, %v355
        %v361 = vsel %vm161, %v353, %v354
        %v362 = vsel %vm161, %v352, %v353
        %v363 = vsel %vm161, %v351, %v352
        %v364 = vsel %vm161, %v350, %v351
        %v365 = vsel %vm161, %v357, %v350
        %v366 = vsel %vm177, %v365, 0.0
        %v367 = vsel %vm178, %v364, 0.0
        %v368 = vsel %vm179, %v363, 0.0
        %v369 = vsel %vm180, %v362, 0.0
        %v370 = vsel %vm181, %v361, 0.0
        %v371 = vsel %vm182, %v360, 0.0
        %v372 = vsel %vm183, %v359, 0.0
        %v373 = vsel %vm184, %v358, 0.0
        %v374 = vadd.f32 %v342, %v366
        %v375 = vadd.f32 %v343, %v367
        %v376 = vadd.f32 %v344, %v368
        %v377 = vadd.f32 %v345, %v369
        %v378 = vadd.f32 %v346, %v370
        %v379 = vadd.f32 %v347, %v371
        %v380 = vadd.f32 %v348, %v372
        %v381 = vadd.f32 %v349, %v373
        %v382 = vrot.slane %v342, 1
        %v383 = vrot.slane %v343, 1
        %v384 = vrot.slane %v344, 1
        %v385 = vrot.slane %v345, 1
        %v386 = vrot.slane %v346, 1
        %v387 = vrot.slane %v347, 1
        %v388 = vrot.slane %v348, 1
        %v389 = vrot.slane %v349, 1
        %v390 = vsel %vm209, %v388, %v389
        %v391 = vsel %vm209, %v387, %v388
        %v392 = vsel %vm209, %v386, %v387
        %v393 = vsel %vm209, %v385, %v386
        %v394 = vsel %vm209, %v384, %v385
        %v395 = vsel %vm209, %v383, %v384
        %v396 = vsel %vm209, %v382, %v383
        %v397 = vsel %vm209, %v389, %v382
        %v398 = vsel %vm218, %v396, 0.0
        %v399 = vsel %vm219, %v395, 0.0
        %v400 = vsel %vm220, %v394, 0.0
        %v401 = vsel %vm221, %v393, 0.0
        %v402 = vsel %vm222, %v392, 0.0
        %v403 = vsel %vm223, %v391, 0.0
        %v404 = vsel %vm224, %v390, 0.0
        %v405 = vsel %vm225, %v397, 0.0
        %v406 = vadd.f32 %v374, %v398
        %v407 = vadd.f32 %v375, %v399
        %v408 = vadd.f32 %v376, %v400
        %v409 = vadd.f32 %v377, %v401
        %v410 = vadd.f32 %v378, %v402
        %v411 = vadd.f32 %v379, %v403
        %v412 = vadd.f32 %v380, %v404
        %v413 = vadd.f32 %v381, %v405
        %v414 = vrot.slane %v342, 6
        %v415 = vrot.slane %v343, 6
        %v416 = vrot.slane %v344, 6
        %v417 = vrot.slane %v345, 6
        %v418 = vrot.slane %v346, 6
        %v419 = vrot.slane %v347, 6
        %v420 = vrot.slane %v348, 6
        %v421 = vrot.slane %v349, 6
        %vm422 = vcmp.lt.s32.totalorder %v160, 2
        %v423 = vsel %vm422, %v420, %v421
        %v424 = vsel %vm422, %v419, %v420
        %v425 = vsel %vm422, %v418, %v419
        %v426 = vsel %vm422, %v417, %v418
        %v427 = vsel %vm422, %v416, %v417
        %v428 = vsel %vm422, %v415, %v416
        %v429 = vsel %vm422, %v414, %v415
        %v430 = vsel %vm422, %v421, %v414
        %vm431 = vcmp.ge.s32.totalorder %v160, 2
        %vm432 = vcmp.ge.s32.totalorder %v170, 2
        %vm433 = vcmp.ge.s32.totalorder %v171, 2
        %vm434 = vcmp.ge.s32.totalorder %v172, 2
        %vm435 = vcmp.ge.s32.totalorder %v173, 2
        %vm436 = vcmp.ge.s32.totalorder %v174, 2
        %vm437 = vcmp.ge.s32.totalorder %v175, 2
        %vm438 = vcmp.ge.s32.totalorder %v176, 2
        %v439 = vsel %vm431, %v430, 0.0
        %v440 = vsel %vm432, %v429, 0.0
        %v441 = vsel %vm433, %v428, 0.0
        %v442 = vsel %vm434, %v427, 0.0
        %v443 = vsel %vm435, %v426, 0.0
        %v444 = vsel %vm436, %v425, 0.0
        %v445 = vsel %vm437, %v424, 0.0
        %v446 = vsel %vm438, %v423, 0.0
        %v447 = vadd.f32 %v406, %v439
        %v448 = vadd.f32 %v407, %v440
        %v449 = vadd.f32 %v408, %v441
        %v450 = vadd.f32 %v409, %v442
        %v451 = vadd.f32 %v410, %v443
        %v452 = vadd.f32 %v411, %v444
        %v453 = vadd.f32 %v412, %v445
        %v454 = vadd.f32 %v413, %v446
        %v455 = vrot.slane %v342, 2
        %v456 = vrot.slane %v343, 2
        %v457 = vrot.slane %v344, 2
        %v458 = vrot.slane %v345, 2
        %v459 = vrot.slane %v346, 2
        %v460 = vrot.slane %v347, 2
        %v461 = vrot.slane %v348, 2
        %v462 = vrot.slane %v349, 2
        %vm463 = vcmp.lt.s32.totalorder %v160, 6
        %v464 = vsel %vm463, %v461, %v462
        %v465 = vsel %vm463, %v460, %v461
        %v466 = vsel %vm463, %v459, %v460
        %v467 = vsel %vm463, %v458, %v459
        %v468 = vsel %vm463, %v457, %v458
        %v469 = vsel %vm463, %v456, %v457
        %v470 = vsel %vm463, %v455, %v456
        %v471 = vsel %vm463, %v462, %v455
        %vm472 = vcmp.lt.s32.totalorder %v160, 62
        %vm473 = vcmp.lt.s32.totalorder %v170, 62
        %vm474 = vcmp.lt.s32.totalorder %v171, 62
        %vm475 = vcmp.lt.s32.totalorder %v172, 62
        %vm476 = vcmp.lt.s32.totalorder %v173, 62
        %vm477 = vcmp.lt.s32.totalorder %v174, 62
        %vm478 = vcmp.lt.s32.totalorder %v175, 62
        %vm479 = vcmp.lt.s32.totalorder %v176, 62
        %v480 = vsel %vm472, %v470, 0.0
        %v481 = vsel %vm473, %v469, 0.0
        %v482 = vsel %vm474, %v468, 0.0
        %v483 = vsel %vm475, %v467, 0.0
        %v484 = vsel %vm476, %v466, 0.0
        %v485 = vsel %vm477, %v465, 0.0
        %v486 = vsel %vm478, %v464, 0.0
        %v487 = vsel %vm479, %v471, 0.0
        %v488 = vadd.f32 %v447, %v480
        %v489 = vadd.f32 %v448, %v481
        %v490 = vadd.f32 %v449, %v482
        %v491 = vadd.f32 %v450, %v483
        %v492 = vadd.f32 %v451, %v484
        %v493 = vadd.f32 %v452, %v485
        %v494 = vadd.f32 %v453, %v486
        %v495 = vadd.f32 %v454, %v487
        %v496 = vrot.slane %v342, 5
        %v497 = vrot.slane %v343, 5
        %v498 = vrot.slane %v344, 5
        %v499 = vrot.slane %v345, 5
        %v500 = vrot.slane %v346, 5
        %v501 = vrot.slane %v347, 5
        %v502 = vrot.slane %v348, 5
        %v503 = vrot.slane %v349, 5
        %vm504 = vcmp.lt.s32.totalorder %v160, 3
        %v505 = vsel %vm504, %v502, %v503
        %v506 = vsel %vm504, %v501, %v502
        %v507 = vsel %vm504, %v500, %v501
        %v508 = vsel %vm504, %v499, %v500
        %v509 = vsel %vm504, %v498, %v499
        %v510 = vsel %vm504, %v497, %v498
        %v511 = vsel %vm504, %v496, %v497
        %v512 = vsel %vm504, %v503, %v496
        %vm513 = vcmp.ge.s32.totalorder %v160, 3
        %vm514 = vcmp.ge.s32.totalorder %v170, 3
        %vm515 = vcmp.ge.s32.totalorder %v171, 3
        %vm516 = vcmp.ge.s32.totalorder %v172, 3
        %vm517 = vcmp.ge.s32.totalorder %v173, 3
        %vm518 = vcmp.ge.s32.totalorder %v174, 3
        %vm519 = vcmp.ge.s32.totalorder %v175, 3
        %vm520 = vcmp.ge.s32.totalorder %v176, 3
        %v521 = vsel %vm513, %v512, 0.0
        %v522 = vsel %vm514, %v511, 0.0
        %v523 = vsel %vm515, %v510, 0.0
        %v524 = vsel %vm516, %v509, 0.0
        %v525 = vsel %vm517, %v508, 0.0
        %v526 = vsel %vm518, %v507, 0.0
        %v527 = vsel %vm519, %v506, 0.0
        %v528 = vsel %vm520, %v505, 0.0
        %v529 = vadd.f32 %v488, %v521
        %v530 = vadd.f32 %v489, %v522
        %v531 = vadd.f32 %v490, %v523
        %v532 = vadd.f32 %v491, %v524
        %v533 = vadd.f32 %v492, %v525
        %v534 = vadd.f32 %v493, %v526
        %v535 = vadd.f32 %v494, %v527
        %v536 = vadd.f32 %v495, %v528
        %v537 = vrot.slane %v342, 3
        %v538 = vrot.slane %v343, 3
        %v539 = vrot.slane %v344, 3
        %v540 = vrot.slane %v345, 3
        %v541 = vrot.slane %v346, 3
        %v542 = vrot.slane %v347, 3
        %v543 = vrot.slane %v348, 3
        %v544 = vrot.slane %v349, 3
        %vm545 = vcmp.lt.s32.totalorder %v160, 5
        %v546 = vsel %vm545, %v543, %v544
        %v547 = vsel %vm545, %v542, %v543
        %v548 = vsel %vm545, %v541, %v542
        %v549 = vsel %vm545, %v540, %v541
        %v550 = vsel %vm545, %v539, %v540
        %v551 = vsel %vm545, %v538, %v539
        %v552 = vsel %vm545, %v537, %v538
        %v553 = vsel %vm545, %v544, %v537
        %vm554 = vcmp.lt.s32.totalorder %v160, 61
        %vm555 = vcmp.lt.s32.totalorder %v170, 61
        %vm556 = vcmp.lt.s32.totalorder %v171, 61
        %vm557 = vcmp.lt.s32.totalorder %v172, 61
        %vm558 = vcmp.lt.s32.totalorder %v173, 61
        %vm559 = vcmp.lt.s32.totalorder %v174, 61
        %vm560 = vcmp.lt.s32.totalorder %v175, 61
        %vm561 = vcmp.lt.s32.totalorder %v176, 61
        %v562 = vsel %vm554, %v552, 0.0
        %v563 = vsel %vm555, %v551, 0.0
        %v564 = vsel %vm556, %v550, 0.0
        %v565 = vsel %vm557, %v549, 0.0
        %v566 = vsel %vm558, %v548, 0.0
        %v567 = vsel %vm559, %v547, 0.0
        %v568 = vsel %vm560, %v546, 0.0
        %v569 = vsel %vm561, %v553, 0.0
        %v570 = vadd.f32 %v529, %v562
        %v571 = vadd.f32 %v530, %v563
        %v572 = vadd.f32 %v531, %v564
        %v573 = vadd.f32 %v532, %v565
        %v574 = vadd.f32 %v533, %v566
        %v575 = vadd.f32 %v534, %v567
        %v576 = vadd.f32 %v535, %v568
        %v577 = vadd.f32 %v536, %v569
        %578 = vrot.lane.b32.xlu0 %v570, 1
        %v579 = vpop.permute.xlu0 %578
        %580 = vrot.lane.b32.xlu0 %v571, 1
        %v581 = vpop.permute.xlu0 %580
        %582 = vrot.lane.b32.xlu0 %v572, 1
        %v583 = vpop.permute.xlu0 %582
        %584 = vrot.lane.b32.xlu0 %v573, 1
        %v585 = vpop.permute.xlu0 %584
        %586 = vrot.lane.b32.xlu0 %v574, 1
        %v587 = vpop.permute.xlu0 %586
        %588 = vrot.lane.b32.xlu0 %v575, 1
        %v589 = vpop.permute.xlu0 %588
        %590 = vrot.lane.b32.xlu0 %v576, 1
        %v591 = vpop.permute.xlu0 %590
        %592 = vrot.lane.b32.xlu0 %v577, 1
        %v593 = vpop.permute.xlu0 %592
        %v594 = vsel %vm260, %v579, 0.0
        %v595 = vsel %vm260, %v581, 0.0
        %v596 = vsel %vm260, %v583, 0.0
        %v597 = vsel %vm260, %v585, 0.0
        %v598 = vsel %vm260, %v587, 0.0
        %v599 = vsel %vm260, %v589, 0.0
        %v600 = vsel %vm260, %v591, 0.0
        %v601 = vsel %vm260, %v593, 0.0
        %v602 = vadd.f32 %v570, %v594
        %v603 = vadd.f32 %v571, %v595
        %v604 = vadd.f32 %v572, %v596
        %v605 = vadd.f32 %v573, %v597
        %v606 = vadd.f32 %v574, %v598
        %v607 = vadd.f32 %v575, %v599
        %v608 = vadd.f32 %v576, %v600
        %v609 = vadd.f32 %v577, %v601
        %610 = vrot.lane.b32.xlu0 %v570, 127
        %v611 = vpop.permute.xlu0 %610
        %612 = vrot.lane.b32.xlu0 %v571, 127
        %v613 = vpop.permute.xlu0 %612
        %614 = vrot.lane.b32.xlu0 %v572, 127
        %v615 = vpop.permute.xlu0 %614
        %616 = vrot.lane.b32.xlu0 %v573, 127
        %v617 = vpop.permute.xlu0 %616
        %618 = vrot.lane.b32.xlu0 %v574, 127
        %v619 = vpop.permute.xlu0 %618
        %620 = vrot.lane.b32.xlu0 %v575, 127
        %v621 = vpop.permute.xlu0 %620
        %622 = vrot.lane.b32.xlu0 %v576, 127
        %v623 = vpop.permute.xlu0 %622
        %624 = vrot.lane.b32.xlu0 %v577, 127
        %v625 = vpop.permute.xlu0 %624
        %v626 = vsel %vm293, %v611, 0.0
        %v627 = vsel %vm293, %v613, 0.0
        %v628 = vsel %vm293, %v615, 0.0
        %v629 = vsel %vm293, %v617, 0.0
        %v630 = vsel %vm293, %v619, 0.0
        %v631 = vsel %vm293, %v621, 0.0
        %v632 = vsel %vm293, %v623, 0.0
        %v633 = vsel %vm293, %v625, 0.0
        %v634 = vadd.f32 %v602, %v626
        %v635 = vadd.f32 %v603, %v627
        %v636 = vadd.f32 %v604, %v628
        %v637 = vadd.f32 %v605, %v629
        %v638 = vadd.f32 %v606, %v630
        %v639 = vadd.f32 %v607, %v631
        %v640 = vadd.f32 %v608, %v632
        %v641 = vadd.f32 %v609, %v633
        %642 = vrot.lane.b32.xlu0 %v570, 2
        %v643 = vpop.permute.xlu0 %642
        %644 = vrot.lane.b32.xlu0 %v571, 2
        %v645 = vpop.permute.xlu0 %644
        %646 = vrot.lane.b32.xlu0 %v572, 2
        %v647 = vpop.permute.xlu0 %646
        %648 = vrot.lane.b32.xlu0 %v573, 2
        %v649 = vpop.permute.xlu0 %648
        %650 = vrot.lane.b32.xlu0 %v574, 2
        %v651 = vpop.permute.xlu0 %650
        %652 = vrot.lane.b32.xlu0 %v575, 2
        %v653 = vpop.permute.xlu0 %652
        %654 = vrot.lane.b32.xlu0 %v576, 2
        %v655 = vpop.permute.xlu0 %654
        %656 = vrot.lane.b32.xlu0 %v577, 2
        %v657 = vpop.permute.xlu0 %656
        %vm658 = vcmp.ge.s32.totalorder %v259, 2
        %v659 = vsel %vm658, %v643, 0.0
        %v660 = vsel %vm658, %v645, 0.0
        %v661 = vsel %vm658, %v647, 0.0
        %v662 = vsel %vm658, %v649, 0.0
        %v663 = vsel %vm658, %v651, 0.0
        %v664 = vsel %vm658, %v653, 0.0
        %v665 = vsel %vm658, %v655, 0.0
        %v666 = vsel %vm658, %v657, 0.0
        %v667 = vadd.f32 %v634, %v659
        %v668 = vadd.f32 %v635, %v660
        %v669 = vadd.f32 %v636, %v661
        %v670 = vadd.f32 %v637, %v662
        %v671 = vadd.f32 %v638, %v663
        %v672 = vadd.f32 %v639, %v664
        %v673 = vadd.f32 %v640, %v665
        %v674 = vadd.f32 %v641, %v666
        %675 = vrot.lane.b32.xlu0 %v570, 126
        %v676 = vpop.permute.xlu0 %675
        %677 = vrot.lane.b32.xlu0 %v571, 126
        %v678 = vpop.permute.xlu0 %677
        %679 = vrot.lane.b32.xlu0 %v572, 126
        %v680 = vpop.permute.xlu0 %679
        %681 = vrot.lane.b32.xlu0 %v573, 126
        %v682 = vpop.permute.xlu0 %681
        %683 = vrot.lane.b32.xlu0 %v574, 126
        %v684 = vpop.permute.xlu0 %683
        %685 = vrot.lane.b32.xlu0 %v575, 126
        %v686 = vpop.permute.xlu0 %685
        %687 = vrot.lane.b32.xlu0 %v576, 126
        %v688 = vpop.permute.xlu0 %687
        %689 = vrot.lane.b32.xlu0 %v577, 126
        %v690 = vpop.permute.xlu0 %689
        %vm691 = vcmp.lt.s32.totalorder %v259, 126
        %v692 = vsel %vm691, %v676, 0.0
        %v693 = vsel %vm691, %v678, 0.0
        %v694 = vsel %vm691, %v680, 0.0
        %v695 = vsel %vm691, %v682, 0.0
        %v696 = vsel %vm691, %v684, 0.0
        %v697 = vsel %vm691, %v686, 0.0
        %v698 = vsel %vm691, %v688, 0.0
        %v699 = vsel %vm691, %v690, 0.0
        %v700 = vadd.f32 %v667, %v692
        %v701 = vadd.f32 %v668, %v693
        %v702 = vadd.f32 %v669, %v694
        %v703 = vadd.f32 %v670, %v695
        %v704 = vadd.f32 %v671, %v696
        %v705 = vadd.f32 %v672, %v697
        %v706 = vadd.f32 %v673, %v698
        %v707 = vadd.f32 %v674, %v699
        %708 = vrot.lane.b32.xlu0 %v570, 3
        %v709 = vpop.permute.xlu0 %708
        %710 = vrot.lane.b32.xlu0 %v571, 3
        %v711 = vpop.permute.xlu0 %710
        %712 = vrot.lane.b32.xlu0 %v572, 3
        %v713 = vpop.permute.xlu0 %712
        %714 = vrot.lane.b32.xlu0 %v573, 3
        %v715 = vpop.permute.xlu0 %714
        %716 = vrot.lane.b32.xlu0 %v574, 3
        %v717 = vpop.permute.xlu0 %716
        %718 = vrot.lane.b32.xlu0 %v575, 3
        %v719 = vpop.permute.xlu0 %718
        %720 = vrot.lane.b32.xlu0 %v576, 3
        %v721 = vpop.permute.xlu0 %720
        %722 = vrot.lane.b32.xlu0 %v577, 3
        %v723 = vpop.permute.xlu0 %722
        %vm724 = vcmp.ge.s32.totalorder %v259, 3
        %v725 = vsel %vm724, %v709, 0.0
        %v726 = vsel %vm724, %v711, 0.0
        %v727 = vsel %vm724, %v713, 0.0
        %v728 = vsel %vm724, %v715, 0.0
        %v729 = vsel %vm724, %v717, 0.0
        %v730 = vsel %vm724, %v719, 0.0
        %v731 = vsel %vm724, %v721, 0.0
        %v732 = vsel %vm724, %v723, 0.0
        %v733 = vadd.f32 %v700, %v725
        %v734 = vadd.f32 %v701, %v726
        %v735 = vadd.f32 %v702, %v727
        %v736 = vadd.f32 %v703, %v728
        %v737 = vadd.f32 %v704, %v729
        %v738 = vadd.f32 %v705, %v730
        %v739 = vadd.f32 %v706, %v731
        %v740 = vadd.f32 %v707, %v732
        %741 = vrot.lane.b32.xlu0 %v570, 125
        %v742 = vpop.permute.xlu0 %741
        %743 = vrot.lane.b32.xlu0 %v571, 125
        %v744 = vpop.permute.xlu0 %743
        %745 = vrot.lane.b32.xlu0 %v572, 125
        %v746 = vpop.permute.xlu0 %745
        %747 = vrot.lane.b32.xlu0 %v573, 125
        %v748 = vpop.permute.xlu0 %747
        %749 = vrot.lane.b32.xlu0 %v574, 125
        %v750 = vpop.permute.xlu0 %749
        %751 = vrot.lane.b32.xlu0 %v575, 125
        %v752 = vpop.permute.xlu0 %751
        %753 = vrot.lane.b32.xlu0 %v576, 125
        %v754 = vpop.permute.xlu0 %753
        %755 = vrot.lane.b32.xlu0 %v577, 125
        %v756 = vpop.permute.xlu0 %755
        %vm757 = vcmp.lt.s32.totalorder %v259, 125
        %v758 = vsel %vm757, %v742, 0.0
        %v759 = vsel %vm757, %v744, 0.0
        %v760 = vsel %vm757, %v746, 0.0
        %v761 = vsel %vm757, %v748, 0.0
        %v762 = vsel %vm757, %v750, 0.0
        %v763 = vsel %vm757, %v752, 0.0
        %v764 = vsel %vm757, %v754, 0.0
        %v765 = vsel %vm757, %v756, 0.0
        %v766 = vadd.f32 %v733, %v758
        %v767 = vadd.f32 %v734, %v759
        %v768 = vadd.f32 %v735, %v760
        %v769 = vadd.f32 %v736, %v761
        %v770 = vadd.f32 %v737, %v762
        %v771 = vadd.f32 %v738, %v763
        %v772 = vadd.f32 %v739, %v764
        %v773 = vadd.f32 %v740, %v765
        %vm774 = vcmp.gt.f32.partialorder %v766, 0.0
        %vm775 = vcmp.gt.f32.partialorder %v767, 0.0
        %vm776 = vcmp.gt.f32.partialorder %v768, 0.0
        %vm777 = vcmp.gt.f32.partialorder %v769, 0.0
        %vm778 = vcmp.gt.f32.partialorder %v770, 0.0
        %vm779 = vcmp.gt.f32.partialorder %v771, 0.0
        %vm780 = vcmp.gt.f32.partialorder %v772, 0.0
        %vm781 = vcmp.gt.f32.partialorder %v773, 0.0
        %v782 = vsel %vm774, 4.0, 1.0
        %v783 = vsel %vm775, 4.0, 1.0
        %v784 = vsel %vm776, 4.0, 1.0
        %v785 = vsel %vm777, 4.0, 1.0
        %v786 = vsel %vm778, 4.0, 1.0
        %v787 = vsel %vm779, 4.0, 1.0
        %v788 = vsel %vm780, 4.0, 1.0
        %v789 = vsel %vm781, 4.0, 1.0
        %790 = vst [vmem:[%s134] sm:$0xff] %v782
        %791 = vst [vmem:[%s134 + $0x8] sm:$0xff] %v783
        %792 = vst [vmem:[%s134 + $0x10] sm:$0xff] %v784
        %793 = vst [vmem:[%s134 + $0x18] sm:$0xff] %v785
        %794 = vst [vmem:[%s134 + $0x20] sm:$0xff] %v786
        %795 = vst [vmem:[%s134 + $0x28] sm:$0xff] %v787
        %796 = vst [vmem:[%s134 + $0x30] sm:$0xff] %v788
        %797 = vst [vmem:[%s134 + $0x38] sm:$0xff] %v789
        %s798 = sand.u32 %s52, 1
        %s799 = scalar_lea.sflag [#allocation4], %s798
        %s800 = sand.u32 %s52, 1
        %s801 = smul.addr %s800, 64
        %s802 = scalar_lea.vmem [#allocation5], %s801
        // Predicated region
        $region29: #{tpu_custom_call.1} parent=23 // pred_check
          %p803 = pneg %p62
        $region30: #{tpu_custom_call.1} parent=23 // pred_check_branch
          %805 = sbr.rel (%p803) target = $region32
        $region31: #{tpu_custom_call.1} parent=23 // pred_region
          %s807 = ssub.s32 1024, 1024
          %808 = vsyncadd %s799, %s807
          %s809 = smul.addr %s18, 8
          %s810 = smul.addr %s809, 128
          %s811 = scalar_lea.hbm %s1, %s810
          %s812 = sshll.u32 %s802, 4
          %s813 = int_to_ptr.vmem [resolvable:$true] %s812
          %818 = dma.vmem_to_hbm [thread:$0]  %s813, 1024, %s811, %s799, 128, 128, 8
        $region32: #{tpu_custom_call.1} parent=23 // pred_fallthru
          _
      $region24: #{tpu_custom_call.1} parent=5 // pred_fallthru
        _
      %p819 = scmp.le.s32.totalorder 2, %s13
      // Predicated region
      $region33: #{tpu_custom_call.1} parent=5 // pred_check
        %p820 = pneg %p819
      $region34: #{tpu_custom_call.1} parent=5 // pred_check_branch
        %822 = sbr.rel (%p820) target = $region36
      $region35: #{tpu_custom_call.1} parent=5 // pred_region
        %s823 = ssub.s32 %s13, 2
        // Predicated region
        $region37: #{tpu_custom_call.1} parent=35 // pred_check
          %p824 = pneg %p68
        $region38: #{tpu_custom_call.1} parent=35 // pred_check_branch
          %826 = sbr.rel (%p824) target = $region40
        $region39: #{tpu_custom_call.1} parent=35 // pred_region
          %s827 = sand.u32 %s53, 1
          %s828 = scalar_lea.sflag [#allocation4], %s827
          %s829 = sand.u32 %s53, 1
          %s830 = smul.addr %s829, 64
          %s831 = scalar_lea.vmem [#allocation5], %s830
          %832 = dma.done %s828, 1024
        $region40: #{tpu_custom_call.1} parent=35 // pred_fallthru
          _
      $region36: #{tpu_custom_call.1} parent=5 // pred_fallthru
        _
    $region6: #{tpu_custom_call.1} parent=1 // loop_footer
      %s17 = sadd.s32 1, %s13
    $region7: #{tpu_custom_call.1} parent=1 // loop_footer_branch
      %12 = sbr.rel target = $region3
    $region8: #{tpu_custom_call.1} parent=1 // loop_exit
      _
    %833 = vsyncpa [#allocation3], 1
    %s834 = scalar_lea.sflag [#allocation3], 1
    %835 = vsyncpa %s834, 1
    %836 = vsyncpa [#allocation4], 1
    %s837 = scalar_lea.sflag [#allocation4], 1
    %838 = vsyncpa %s837, 1

</llo_original>
